<compile_context>
chip_gen: v6e
topology: v6e:2x2x1
jax: 0.10.0
libtpu: 0.0.40
codegen_flags: <defaults>
</compile_context>

<pallas_src>
import jax
import jax.numpy as jnp
from jax.experimental import pallas as pl
from jax.experimental.pallas import tpu as pltpu

LANE = 128


def _round_up(x, m):
    return ((x + m - 1) // m) * m


def _cdiv(a, b):
    return (a + b - 1) // b


def _num_tensorcores():
    """Best-effort TensorCores-per-device (v4 megacore / v7x -> 2, else 1)."""
    try:
        kind = jax.devices()[0].device_kind.lower()
    except Exception:
        return 1
    return 2 if ("v4" in kind or "v7" in kind) else 1


def _nsp_head_kernel(x_ref, w_ref, b_ref, o_ref):
    # [tm, H] @ [H, Np] -> [tm, Np] on the MXU, f32 accumulation; bias added in
    # f32; single downcast to the output dtype.
    y = jnp.dot(x_ref[...], w_ref[...], preferred_element_type=jnp.float32)
    o_ref[...] = (y + b_ref[...].astype(jnp.float32)).astype(o_ref.dtype)


def prepare_nsp_params(weight, bias):
    """One-time layout prep (hoist out of the per-call hot path).

    Torch nn.Linear layout [num_labels, H] / [num_labels] -> lane-padded
    [H, Np] / [1, Np] with Np = 128, so output stores are unmasked lane-dense
    vst and the MXU N dimension is well shaped.
    """
    num_labels, H = weight.shape
    Np = _round_up(max(num_labels, LANE), LANE)
    w_t = jnp.zeros((H, Np), dtype=weight.dtype).at[:, :num_labels].set(weight.T)
    b_p = jnp.zeros((1, Np), dtype=bias.dtype).at[0, :num_labels].set(bias)
    return w_t, b_p


def nsp_head_apply(pooled_output, w_t, b_p, num_labels, *, tm_max=2048):
    """seq_relationship_score = pooled_output @ W^T + b, with prepared params."""
    *lead, H = pooled_output.shape
    B = 1
    for d in lead:
        B *= d
    x = pooled_output.reshape(B, H)
    Np = w_t.shape[1]

    x_item = jnp.dtype(x.dtype).itemsize
    # Sublane packing: 8 rows for 4-byte dtypes, 16 for bf16/fp16, 32 for int8.
    pack = max(8, 32 // x_item)

    # Row tile: as large as tm_max / B allow (amortizes per-step overhead).
    # No jnp.pad of x: the ragged last block is handled by Pallas masking.
    tm = min(_round_up(tm_max, pack), _round_up(B, pack))
    steps = _cdiv(B, tm)
    # Dual-TC chips: make sure the 'parallel' row axis has >= 2 grid steps so
    # both TensorCores get work; single-TC chips keep tm maximal.
    if steps < 2 and _num_tensorcores() > 1 and B > 2 * pack:
        tm = _round_up(_cdiv(B, 2), pack)
        steps = _cdiv(B, tm)

    out_item = x_item
    w_item = jnp.dtype(w_t.dtype).itemsize
    # Explicit VMEM budget: double-buffered x/out tiles + weight/bias buffers +
    # slack.  Matters on v5e (16 MiB scoped default) once tm grows; capped well
    # under v7x's 64 MiB physical VMEM.
    vmem_needed = (
        2 * tm * H * x_item            # x tiles (double buffered)
        + 2 * tm * Np * out_item       # out tiles (double buffered)
        + 2 * (H * Np + Np) * w_item   # weight + bias buffers
    )
    vmem_limit = int(min(max(vmem_needed + (4 << 20), 16 << 20), 48 << 20))

    # Advisory cost: actual rows / bytes actually moved (no padding factors).
    cost = pl.CostEstimate(
        flops=2 * B * H * Np,
        transcendentals=0,
        bytes_accessed=B * H * x_item + (H * Np + Np) * w_item + B * Np * out_item,
    )

    out = pl.pallas_call(
        _nsp_head_kernel,
        out_shape=jax.ShapeDtypeStruct((B, Np), pooled_output.dtype),
        grid_spec=pltpu.PrefetchScalarGridSpec(
            num_scalar_prefetch=0,
            grid=(steps,),
            in_specs=[
                pl.BlockSpec((tm, H), lambda i: (i, 0)),   # pooled rows (streamed)
                pl.BlockSpec((H, Np), lambda i: (0, 0)),   # weight (grid-invariant)
                pl.BlockSpec((1, Np), lambda i: (0, 0)),   # bias   (grid-invariant)
            ],
            out_specs=pl.BlockSpec((tm, Np), lambda i: (i, 0)),
        ),
        compiler_params=pltpu.CompilerParams(
            dimension_semantics=("parallel",),
            vmem_limit_bytes=vmem_limit,
        ),
        cost_estimate=cost,
    )(x, w_t, b_p)

    return out[:, :num_labels].reshape(*lead, num_labels)


def medical_bert_only_nsp_head(pooled_output, weight, bias, *, tm_max=2048):
    """Drop-in convenience path (prefer prepare_nsp_params once at model init)."""
    w_t, b_p = prepare_nsp_params(weight, bias)
    return nsp_head_apply(pooled_output, w_t, b_p, weight.shape[0], tm_max=tm_max)


def _reference(pooled_output, weight, bias):
    return pooled_output @ weight.T + bias


if __name__ == "__main__":
    key = jax.random.PRNGKey(0)
    B, H, NUM_LABELS = 2, 32, 2  # batch, hidden_size, NSP labels

    k1, k2, k3 = jax.random.split(key, 3)
    pooled_output = jax.random.normal(k1, (B, H), dtype=jnp.float32)
    # Torch nn.Linear layout: weight [out, in], bias [out].
    weight = 0.02 * jax.random.normal(k2, (NUM_LABELS, H), dtype=jnp.float32)
    bias = 0.01 * jax.random.normal(k3, (NUM_LABELS,), dtype=jnp.float32)

    # Hoisted weight prep (done once per model), then the hot-path apply.
    w_t, b_p = prepare_nsp_params(weight, bias)
    out = nsp_head_apply(pooled_output, w_t, b_p, NUM_LABELS)
    out = jax.block_until_ready(out)

    ref = _reference(pooled_output, weight, bias)
    assert out.shape == (B, NUM_LABELS)
    assert jnp.allclose(out, ref, atol=1e-5, rtol=1e-5), "mismatch vs reference"

    # Also exercise the drop-in convenience wrapper.
    out2 = jax.block_until_ready(medical_bert_only_nsp_head(pooled_output, weight, bias))
    assert jnp.allclose(out2, ref, atol=1e-5, rtol=1e-5), "wrapper mismatch vs reference"

    print("KERNEL_OK")
</pallas_src>

<mosaic_0001>
module attributes {stable_mosaic.version = 11 : i64} {
  func.func @_nsp_head_kernel(%arg0: i32, %arg1: memref<8x32xf32, #tpu.memory_space<vmem>>, %arg2: memref<32x128xf32, #tpu.memory_space<vmem>>, %arg3: memref<1x128xf32, #tpu.memory_space<vmem>>, %arg4: memref<8x128xf32, #tpu.memory_space<vmem>>) attributes {dimension_semantics = [#tpu.dimension_semantics<parallel>], iteration_bounds = array<i64: 1>, scalar_prefetch = 0 : i64, scratch_operands = 0 : i64, tpu.core_type = #tpu.core_type<tc>, window_params = [{transform_indices = @transform_0, window_bounds = array<i64: 8, 32>}, {pipeline_mode = #tpu.pipeline_mode<synchronous>, transform_indices = @transform_1, window_bounds = array<i64: 32, 128>}, {pipeline_mode = #tpu.pipeline_mode<synchronous>, transform_indices = @transform_2, window_bounds = array<i64: 1, 128>}, {transform_indices = @transform_3, window_bounds = array<i64: 8, 128>}]} {
    %c0 = arith.constant 0 : index
    %c0_0 = arith.constant 0 : index
    %0 = vector.load %arg1[%c0, %c0_0] : memref<8x32xf32, #tpu.memory_space<vmem>>, vector<8x32xf32>
    %c0_1 = arith.constant 0 : index
    %c0_2 = arith.constant 0 : index
    %1 = vector.load %arg2[%c0_1, %c0_2] : memref<32x128xf32, #tpu.memory_space<vmem>>, vector<32x128xf32>
    %cst = arith.constant dense<0.000000e+00> : vector<8x128xf32>
    %2 = tpu.matmul %0, %1, %cst {dimension_numbers = #tpu.dot_dimension_numbers<[1], [0], [0], [1], [0, 0, 1, 1], [], []>} : vector<8x32xf32>, vector<32x128xf32>, vector<8x128xf32> -> vector<8x128xf32>
    %c0_3 = arith.constant 0 : index
    %c0_4 = arith.constant 0 : index
    %3 = vector.load %arg3[%c0_3, %c0_4] : memref<1x128xf32, #tpu.memory_space<vmem>>, vector<1x128xf32>
    %4 = vector.broadcast %3 : vector<1x128xf32> to vector<8x128xf32>
    %5 = arith.addf %2, %4 : vector<8x128xf32>
    %c0_5 = arith.constant 0 : index
    %c0_6 = arith.constant 0 : index
    %6 = vector.load %arg4[%c0_5, %c0_6] : memref<8x128xf32, #tpu.memory_space<vmem>>, vector<8x128xf32>
    tpu.vector_store %arg4[%c0_5, %c0_6], %5 {strides = array<i32>} : memref<8x128xf32, #tpu.memory_space<vmem>>, vector<8x128xf32>,
    return
  }
  func.func @transform_0(%arg0: i32) -> (i32, i32) {
    %c0_i32 = arith.constant 0 : i32
    %c0_i32_0 = arith.constant 0 : i32
    return %arg0, %c0_i32 : i32, i32
  }
  func.func @transform_1(%arg0: i32) -> (i32, i32) {
    %c0_i32 = arith.constant 0 : i32
    %c0_i32_0 = arith.constant 0 : i32
    %c0_i32_1 = arith.constant 0 : i32
    return %c0_i32, %c0_i32_0 : i32, i32
  }
  func.func @transform_2(%arg0: i32) -> (i32, i32) {
    %c0_i32 = arith.constant 0 : i32
    %c0_i32_0 = arith.constant 0 : i32
    %c0_i32_1 = arith.constant 0 : i32
    return %c0_i32, %c0_i32_0 : i32, i32
  }
  func.func @transform_3(%arg0: i32) -> (i32, i32) {
    %c0_i32 = arith.constant 0 : i32
    %c0_i32_0 = arith.constant 0 : i32
    return %arg0, %c0_i32 : i32, i32
  }
}

</mosaic_0001>

<llo_original>
// kernel: tpu_custom_call.1
$region0: #{tpu_custom_call.1}
  #allocation0 [shape = 'u32[]', space=smem, size = 0x4, offset = 0x4, fixed_abs, tag = 'smem constant byte address 0x4 - core index']
  #allocation1 [shape = 'u32[144,128]{1,0:T(1,128)}', space=vmem, size = 0x12000, scoped, tag = 'internal scratch']
  %s0 = inlined_call_operand.hbm [shape: f32[2,32], index: 0, kind: input, shape index: {}]
  %s1 = inlined_call_operand.hbm [shape: f32[32,128], index: 1, kind: input, shape index: {}]
  %s2 = inlined_call_operand.vmem [shape: f32[1,128], index: 2, kind: input, shape index: {}]
  %s3 = inlined_call_operand.hbm [shape: f32[2,128], index: 3, kind: output, shape index: {}]
  %s4 = sld [smem:[#allocation0]]
  $region30: #{tpu_custom_call.1} parent=0
    _
  %s6 = ssub.s32 1, %s4
  %s7 = scalar_select 0, %s6, %s4
  $region1: #{tpu_custom_call.1} parent=0
    #allocation2 [shape = 'u8[4096]{0}', space=vmem, size = 0x1000, scoped, tag = 'input window, operand 0, single buffered']
    #allocation3 [shape = 's32[1]{0}', space=sflag, size = 0x4, scoped, tag = 'scoped memory for tpu_custom_call.1']
    #allocation4 [shape = 's32[1]{0}', space=sflag, size = 0x4, scoped, tag = 'scoped memory for tpu_custom_call.1']
    #allocation5 [shape = 'u8[16384]{0}', space=vmem, size = 0x4000, scoped, tag = 'input window, operand 1, single buffered']
    #allocation6 [shape = 's32[1]{0}', space=sflag, size = 0x4, scoped, tag = 'scoped memory for tpu_custom_call.1']
    #allocation7 [shape = 'u8[4096]{0}', space=vmem, size = 0x1000, scoped, tag = 'output window, operand 0, single buffered']
    %8 = vsyncpa [#allocation3], 0
    %9 = vsyncpa [#allocation6], 0
    %10 = vsyncpa [#allocation4], 0
    // Predicated region
    $region2: #{tpu_custom_call.1} parent=1 // pred_check
      _
    $region3: #{tpu_custom_call.1} parent=1 // pred_check_branch
      %12 = sbr.rel (0) target = $region5
    $region4: #{tpu_custom_call.1} parent=1 // pred_region
      %s14 = ssub.s32 128, 32
      %15 = vsyncadd [#allocation3], %s14
      %s16 = sshll.u32 [#allocation2], 4
      %s17 = int_to_ptr.vmem [resolvable:$true] %s16
      %22 = dma.hbm_to_vmem [thread:$0]  %s0, 32, %s17, [#allocation3], 32, 32, 2
    $region5: #{tpu_custom_call.1} parent=1 // pred_fallthru
      _
    // Predicated region
    $region6: #{tpu_custom_call.1} parent=1 // pred_check
      _
    $region7: #{tpu_custom_call.1} parent=1 // pred_check_branch
      %24 = sbr.rel (0) target = $region9
    $region8: #{tpu_custom_call.1} parent=1 // pred_region
      %s26 = ssub.s32 512, 512
      %27 = vsyncadd [#allocation6], %s26
      %s28 = sshll.u32 [#allocation5], 4
      %s29 = int_to_ptr.vmem [resolvable:$true] %s28
      %34 = dma.hbm_to_vmem [thread:$0]  %s1, 512, %s29, [#allocation6], 128, 128, 8
    $region9: #{tpu_custom_call.1} parent=1 // pred_fallthru
      _
    // Predicated region
    $region10: #{tpu_custom_call.1} parent=1 // pred_check
      _
    $region11: #{tpu_custom_call.1} parent=1 // pred_check_branch
      %36 = sbr.rel (0) target = $region13
    $region12: #{tpu_custom_call.1} parent=1 // pred_region
      _
    $region13: #{tpu_custom_call.1} parent=1 // pred_fallthru
      _
    // Predicated region
    $region14: #{tpu_custom_call.1} parent=1 // pred_check
      _
    $region15: #{tpu_custom_call.1} parent=1 // pred_check_branch
      %38 = sbr.rel (0) target = $region17
    $region16: #{tpu_custom_call.1} parent=1 // pred_region
      %39 = dma.done [#allocation3], 128
    $region17: #{tpu_custom_call.1} parent=1 // pred_fallthru
      _
    // Predicated region
    $region18: #{tpu_custom_call.1} parent=1 // pred_check
      _
    $region19: #{tpu_custom_call.1} parent=1 // pred_check_branch
      %41 = sbr.rel (0) target = $region21
    $region20: #{tpu_custom_call.1} parent=1 // pred_region
      %42 = dma.done [#allocation6], 512
    $region21: #{tpu_custom_call.1} parent=1 // pred_fallthru
      _
    %v43 = vld [vmem:[#allocation2] sm:$0xff]
    %v44 = vld [vmem:[#allocation5] sm:$0xff]
    %v45 = vld [vmem:[#allocation5 + $0x8] sm:$0xff]
    %v46 = vld [vmem:[#allocation5 + $0x10] sm:$0xff]
    %v47 = vld [vmem:[#allocation5 + $0x18] sm:$0xff]
    %v48 = vld [vmem:[%s2] sm:$0x1]
    %v50 = vlaneseq
    %v51 = vshrl.u32 %v50, 7
    %v52 = vsub.s32 0, %v51
    %v53 = vrot.slane %v48, %v52
    %vm55 = vcmask 261120
    %v57 = vsel %vm55, %v43, 0
    %59 = vmatprep.subr.mxu0 0.0
    %60 = vmatpush1.msra.mxu0 0.0
    %61 = vmatprep.subr.mxu0 0.0
    %62 = vmatpush1.msra.mxu0 0.0
    %63 = vmatprep.subr.mxu0 0.0
    %64 = vmatpush1.msra.mxu0 0.0
    %65 = vmatprep.subr.mxu0 0.0
    %66 = vmatpush1.msra.mxu0 0.0
    %67 = vmatprep.subr.mxu0 0.0
    %68 = vmatpush1.msra.mxu0 0.0
    %69 = vmatprep.subr.mxu0 0.0
    %70 = vmatpush1.msra.mxu0 0.0
    %71 = vmatprep.subr.mxu0 0.0
    %72 = vmatpush1.msra.mxu0 0.0
    %73 = vmatprep.subr.mxu0 0.0
    %74 = vmatpush1.msra.mxu0 0.0
    %75 = vmatprep.subr.mxu0 0.0
    %76 = vmatpush1.msra.mxu0 0.0
    %77 = vmatprep.subr.mxu0 0.0
    %78 = vmatpush1.msra.mxu0 0.0
    %79 = vmatprep.subr.mxu0 0.0
    %80 = vmatpush1.msra.mxu0 0.0
    %81 = vmatprep.subr.mxu0 0.0
    %82 = vmatpush1.msra.mxu0 0.0
    %83 = vmatprep.subr.mxu0 0.0
    %84 = vmatpush1.msra.mxu0 %v47
    %85 = vmatprep.subr.mxu0 0.0
    %86 = vmatpush1.msra.mxu0 %v46
    %87 = vmatprep.subr.mxu0 0.0
    %88 = vmatpush1.msra.mxu0 %v45
    %89 = vmatprep.subr.mxu0 0.0
    %90 = vmatpush1.msra.mxu0 %v44
    %91 = vmatprep.subr.mxu0 0.0
    %92 = vmatpush2.msra.mxu0 0.0
    %93 = vmatprep.subr.mxu0 0.0
    %94 = vmatpush2.msra.mxu0 0.0
    %95 = vmatprep.subr.mxu0 0.0
    %96 = vmatpush2.msra.mxu0 0.0
    %97 = vmatprep.subr.mxu0 0.0
    %98 = vmatpush2.msra.mxu0 0.0
    %99 = vmatprep.subr.mxu0 0.0
    %100 = vmatpush2.msra.mxu0 0.0
    %101 = vmatprep.subr.mxu0 0.0
    %102 = vmatpush2.msra.mxu0 0.0
    %103 = vmatprep.subr.mxu0 0.0
    %104 = vmatpush2.msra.mxu0 0.0
    %105 = vmatprep.subr.mxu0 0.0
    %106 = vmatpush2.msra.mxu0 0.0
    %107 = vmatprep.subr.mxu0 0.0
    %108 = vmatpush2.msra.mxu0 0.0
    %109 = vmatprep.subr.mxu0 0.0
    %110 = vmatpush2.msra.mxu0 0.0
    %111 = vmatprep.subr.mxu0 0.0
    %112 = vmatpush2.msra.mxu0 0.0
    %113 = vmatprep.subr.mxu0 0.0
    %114 = vmatpush2.msra.mxu0 0.0
    %115 = vmatprep.subr.mxu0 0.0
    %116 = vmatpush2.msra.mxu0 0.0
    %117 = vmatprep.subr.mxu0 0.0
    %118 = vmatpush2.msra.mxu0 0.0
    %119 = vmatprep.subr.mxu0 0.0
    %120 = vmatpush2.msra.mxu0 0.0
    %121 = vmatprep.subr.mxu0 0.0
    %122 = vmatpush2.msra.mxu0 0.0
    %123 = vmatprep.mubr.f32.mxu0 0.0
    %124 = vmatmul.mubr.f32.gmra.mxu0 %v57
    %v125 = vpop.f32.mrf.mxu0
    %v126 = vadd.f32 %v53, %v125
    %v127 = vpop.f32.mrf.mxu0
    %128 = vdwg.mxu0
    %129 = vst [vmem:[#allocation7] sm:$0xff] %v126
    // Predicated region
    $region22: #{tpu_custom_call.1} parent=1 // pred_check
      _
    $region23: #{tpu_custom_call.1} parent=1 // pred_check_branch
      %131 = sbr.rel (0) target = $region25
    $region24: #{tpu_custom_call.1} parent=1 // pred_region
      %s133 = ssub.s32 128, 32
      %134 = vsyncadd [#allocation4], %s133
      %s135 = sshll.u32 [#allocation7], 4
      %s136 = int_to_ptr.vmem [resolvable:$true] %s135
      %141 = dma.vmem_to_hbm [thread:$0]  %s136, 32, %s3, [#allocation4], 32, 32, 2
    $region25: #{tpu_custom_call.1} parent=1 // pred_fallthru
      _
    // Predicated region
    $region26: #{tpu_custom_call.1} parent=1 // pred_check
      _
    $region27: #{tpu_custom_call.1} parent=1 // pred_check_branch
      %143 = sbr.rel (0) target = $region29
    $region28: #{tpu_custom_call.1} parent=1 // pred_region
      %144 = dma.done [#allocation4], 128
    $region29: #{tpu_custom_call.1} parent=1 // pred_fallthru
      _
    %145 = vsyncpa [#allocation3], 1
    %146 = vsyncpa [#allocation6], 1
    %147 = vsyncpa [#allocation4], 1

</llo_original>
